<compile_context>
chip_gen: v6e
topology: v6e:2x2x1
jax: 0.10.0
libtpu: 0.0.40
codegen_flags: <defaults>
</compile_context>

<pallas_src>
import functools

import jax
import jax.numpy as jnp
from jax.experimental import pallas as pl
from jax.experimental.pallas import tpu as pltpu


def _dwconv_body(x_ref, top_ref, bot_ref, w_ref, b_ref, o_ref, *, C, TH, WC):
    f32 = jnp.float32
    x = x_ref[0]                       # (TH, WC), native dtype
    w = w_ref[...]                     # (9, WC) f32, per-source-column masked
    bias = b_ref[...]                  # (1, WC) f32

    def lroll(v, s):                   # lane roll (XLU); skip when a no-op
        s = s % WC
        return v if s == 0 else pltpu.roll(v, s, axis=1)

    # Halo rows (native dtype), zeroed at the image borders.
    if top_ref is None:                # single H-tile: image border on both sides
        top = jnp.zeros((1, WC), x.dtype)
        bot = jnp.zeros((1, WC), x.dtype)
    else:
        i = pl.program_id(1)
        top = top_ref[0, 7:8, :]       # row just above this tile
        bot = bot_ref[0, 0:1, :]       # row just below this tile
        top = jnp.where(i == 0, jnp.zeros_like(top), top)
        bot = jnp.where(i == pl.num_programs(1) - 1, jnp.zeros_like(bot), bot)

    # +-1-row planes via circular sublane rolls (XLU).  Row 0 of `xp` and row
    # TH-1 of `xn` wrap around; they are corrected below on just those 2 rows.
    if TH > 1:
        xp = pltpu.roll(x, 1, axis=0)        # xp[r] == x[r-1]
        xn = pltpu.roll(x, TH - 1, axis=0)   # xn[r] == x[r+1]
    else:
        xp, xn = x, x

    xf, pf, nf = x.astype(f32), xp.astype(f32), xn.astype(f32)

    # Per-source-column partial sums for each kw tap.  Weights are pre-masked
    # to zero where a source column's tap would land outside [0, W).
    s0 = pf * w[0:1] + xf * w[3:4] + nf * w[6:7]     # kw = 0
    s1 = pf * w[1:2] + xf * w[4:5] + nf * w[7:8]     # kw = 1
    s2 = pf * w[2:3] + xf * w[5:6] + nf * w[8:9]     # kw = 2

    # Shift kw=0 / kw=2 partial sums onto their output column: 2 lane rolls.
    acc = bias + s1 + lroll(s0, C) + lroll(s2, WC - C)
    o_ref[0] = acc.astype(o_ref.dtype)

    # Boundary fix-up: replace the wrapped-around row contribution by the true
    # halo row.  Touches only rows 0 and TH-1 (tiny (1, WC) work).
    dp = top.astype(f32) - x[TH - 1:TH, :].astype(f32)
    dn = bot.astype(f32) - x[0:1, :].astype(f32)
    c_top = dp * w[1:2] + lroll(dp * w[0:1], C) + lroll(dp * w[2:3], WC - C)
    c_bot = dn * w[7:8] + lroll(dn * w[6:7], C) + lroll(dn * w[8:9], WC - C)
    if TH > 1:
        o_ref[0, 0:1, :] = (acc[0:1, :] + c_top).astype(o_ref.dtype)
        o_ref[0, TH - 1:TH, :] = (acc[TH - 1:TH, :] + c_bot).astype(o_ref.dtype)
    else:
        o_ref[0, 0:1, :] = (acc + c_top + c_bot).astype(o_ref.dtype)


def _dwconv_kernel_single(x_ref, w_ref, b_ref, o_ref, *, C, TH, WC):
    _dwconv_body(x_ref, None, None, w_ref, b_ref, o_ref, C=C, TH=TH, WC=WC)


def _dwconv_kernel_halo(tb_ref, bb_ref, x_ref, top_ref, bot_ref, w_ref, b_ref,
                        o_ref, *, C, TH, WC):
    del tb_ref, bb_ref  # consumed by the index_maps only
    _dwconv_body(x_ref, top_ref, bot_ref, w_ref, b_ref, o_ref, C=C, TH=TH, WC=WC)


def _pick_tile_h(H, WC, elem_bytes, B, target_bytes=4 * 1024 * 1024):
    """Largest multiple-of-8 divisor of H whose (TH, W*C) block fits the target.

    Falls back to one full-height tile if H has no multiple-of-8 divisor (for
    very large such H this single block could exceed VMEM -- robustness edge
    case only).  When B == 1, prefers >= 2 H-tiles for v7x megacore balance.
    """
    divisors = [t for t in range(8, H + 1, 8) if H % t == 0]
    if not divisors:
        return H
    fitting = [t for t in divisors if t * WC * elem_bytes <= target_bytes]
    if not fitting:
        fitting = [divisors[0]]
    th = max(fitting)
    if B * (H // th) < 2:            # keep both TensorCores busy when possible
        two_plus = [t for t in fitting if H // t >= 2]
        if two_plus:
            th = max(two_plus)
    return th


def dwconv_pallas(x_bnc, weight_oihw, bias, H, W):
    """Depthwise 3x3 conv matching DWConv.forward.  x: (B, N, C), N == H*W."""
    B, N, C = x_bnc.shape
    assert N == H * W, "sequence length must equal H*W"
    WC = W * C
    # Lane-dense stores want W*C % 128 == 0 (true for SegFormer stages); the
    # kernel stays correct otherwise, just uses masked partial stores.
    elem_bytes = jnp.dtype(x_bnc.dtype).itemsize
    TH = _pick_tile_h(H, WC, elem_bytes, B)
    n_th = H // TH

    # (B, N, C) -> (B, H, W*C): pure reshape, no transpose, no padding.
    x_rows = x_bnc.reshape(B, H, WC)

    # PyTorch depthwise weight (C, 1, 3, 3) -> (9, W*C) f32, tiled over W and
    # masked per SOURCE column: zero where that column's tap would land
    # outside [0, W) (this reproduces the padding=1 zero padding in W).
    w9c = jnp.transpose(weight_oihw[:, 0, :, :], (1, 2, 0)).reshape(9, C)
    w9c = w9c.astype(jnp.float32)
    kw_idx = jnp.arange(9, dtype=jnp.int32) % 3
    dst_w = jnp.arange(W, dtype=jnp.int32)[None, :] + 1 - kw_idx[:, None]  # (9, W)
    valid = ((dst_w >= 0) & (dst_w < W)).astype(jnp.float32)
    w_tiled = (valid[:, :, None] * w9c[:, None, :]).reshape(9, WC)
    b_tiled = jnp.tile(bias.astype(jnp.float32), W).reshape(1, WC)

    cp = pltpu.CompilerParams(
        dimension_semantics=("parallel",) * (1 if n_th == 1 else 2),
        vmem_limit_bytes=32 * 1024 * 1024,
    )
    out_shape = jax.ShapeDtypeStruct((B, H, WC), x_bnc.dtype)

    if n_th == 1:
        kernel = functools.partial(_dwconv_kernel_single, C=C, TH=TH, WC=WC)
        out = pl.pallas_call(
            kernel,
            out_shape=out_shape,
            grid_spec=pltpu.PrefetchScalarGridSpec(
                num_scalar_prefetch=0,
                grid=(B,),
                in_specs=[
                    pl.BlockSpec((1, TH, WC), lambda b: (b, 0, 0)),
                    pl.BlockSpec((9, WC), lambda b: (0, 0)),
                    pl.BlockSpec((1, WC), lambda b: (0, 0)),
                ],
                out_specs=pl.BlockSpec((1, TH, WC), lambda b: (b, 0, 0)),
            ),
            compiler_params=cp,
        )(x_rows, w_tiled, b_tiled)
    else:
        # Halo rows come straight from HBM as the 8-row-aligned blocks just
        # above / below each tile; their block indices are scalar-prefetched
        # and clamped at the image borders (the clamped blocks are zeroed
        # in-kernel).  TH is always a multiple of 8 on this path.
        r8 = TH // 8
        nb8 = H // 8
        ii = jnp.arange(n_th, dtype=jnp.int32)
        top_blk = jnp.maximum(ii * r8 - 1, 0)
        bot_blk = jnp.minimum((ii + 1) * r8, nb8 - 1)
        kernel = functools.partial(_dwconv_kernel_halo, C=C, TH=TH, WC=WC)
        out = pl.pallas_call(
            kernel,
            out_shape=out_shape,
            grid_spec=pltpu.PrefetchScalarGridSpec(
                num_scalar_prefetch=2,
                grid=(B, n_th),
                in_specs=[
                    pl.BlockSpec((1, TH, WC), lambda b, i, tb, bb: (b, i, 0)),
                    pl.BlockSpec((1, 8, WC), lambda b, i, tb, bb: (b, tb[i], 0)),
                    pl.BlockSpec((1, 8, WC), lambda b, i, tb, bb: (b, bb[i], 0)),
                    pl.BlockSpec((9, WC), lambda b, i, tb, bb: (0, 0)),
                    pl.BlockSpec((1, WC), lambda b, i, tb, bb: (0, 0)),
                ],
                out_specs=pl.BlockSpec((1, TH, WC), lambda b, i, tb, bb: (b, i, 0)),
            ),
            compiler_params=cp,
        )(top_blk, bot_blk, x_rows, x_rows, x_rows, w_tiled, b_tiled)

    # (B, H, W*C) -> (B, N, C): pure reshape (== flatten(2).transpose(1, 2)).
    return out.reshape(B, N, C)


def dwconv_reference(x_bnc, weight_oihw, bias, H, W):
    """Pure-JAX reference mirroring the PyTorch NCHW forward."""
    B, N, C = x_bnc.shape
    x_nchw = jnp.transpose(x_bnc, (0, 2, 1)).reshape(B, C, H, W)
    out = jax.lax.conv_general_dilated(
        x_nchw, weight_oihw,
        window_strides=(1, 1), padding=((1, 1), (1, 1)),
        dimension_numbers=("NCHW", "OIHW", "NCHW"),
        feature_group_count=C)
    out = out + bias[None, :, None, None]
    return jnp.transpose(out.reshape(B, C, H * W), (0, 2, 1))


def _run_case(key, B, H, W, C):
    kx, kw, kb = jax.random.split(key, 3)
    x = jax.random.normal(kx, (B, H * W, C), dtype=jnp.float32)
    # Params matching nn.Conv2d(C, C, 3, padding=1, groups=C, bias=True)
    weight = jax.random.normal(kw, (C, 1, 3, 3), dtype=jnp.float32) * 0.1
    bias = jax.random.normal(kb, (C,), dtype=jnp.float32) * 0.1

    out = jax.block_until_ready(dwconv_pallas(x, weight, bias, H, W))
    ref = dwconv_reference(x, weight, bias, H, W)
    assert out.shape == (B, H * W, C)
    assert jnp.allclose(out, ref, atol=1e-5, rtol=1e-5), (
        f"mismatch vs reference for B={B} H={H} W={W} C={C}")


if __name__ == "__main__":
    key = jax.random.PRNGKey(0)
    k1, k2 = jax.random.split(key)
    # Small DWConv-consistent shape (single-tile path): B=2, H=W=8, dim=C=32.
    _run_case(k1, B=2, H=8, W=8, C=32)
    # Multi-tile path (BlockSpec halo rows + scalar prefetch + megacore split).
    _run_case(k2, B=1, H=32, W=8, C=32)
    print("KERNEL_OK")
</pallas_src>

<mosaic_0001>
module attributes {stable_mosaic.version = 11 : i64} {
  func.func @_dwconv_kernel_single(%arg0: i32, %arg1: memref<1x8x256xf32, #tpu.memory_space<vmem>>, %arg2: memref<9x256xf32, #tpu.memory_space<vmem>>, %arg3: memref<1x256xf32, #tpu.memory_space<vmem>>, %arg4: memref<1x8x256xf32, #tpu.memory_space<vmem>>) attributes {dimension_semantics = [#tpu.dimension_semantics<parallel>], iteration_bounds = array<i64: 2>, scalar_prefetch = 0 : i64, scratch_operands = 0 : i64, tpu.core_type = #tpu.core_type<tc>, window_params = [{transform_indices = @transform_0, window_bounds = array<i64: 1, 8, 256>}, {pipeline_mode = #tpu.pipeline_mode<synchronous>, transform_indices = @transform_1, window_bounds = array<i64: 9, 256>}, {pipeline_mode = #tpu.pipeline_mode<synchronous>, transform_indices = @transform_2, window_bounds = array<i64: 1, 256>}, {transform_indices = @transform_3, window_bounds = array<i64: 1, 8, 256>}]} {
    %c0 = arith.constant 0 : index
    %c0_0 = arith.constant 0 : index
    %c0_1 = arith.constant 0 : index
    %0 = vector.load %arg1[%c0, %c0_0, %c0_1] : memref<1x8x256xf32, #tpu.memory_space<vmem>>, vector<1x8x256xf32>
    %1 = vector.shape_cast %0 : vector<1x8x256xf32> to vector<8x256xf32>
    %c0_2 = arith.constant 0 : index
    %c0_3 = arith.constant 0 : index
    %2 = vector.load %arg2[%c0_2, %c0_3] : memref<9x256xf32, #tpu.memory_space<vmem>>, vector<9x256xf32>
    %c0_4 = arith.constant 0 : index
    %c0_5 = arith.constant 0 : index
    %3 = vector.load %arg3[%c0_4, %c0_5] : memref<1x256xf32, #tpu.memory_space<vmem>>, vector<1x256xf32>
    %cst = arith.constant 0.000000e+00 : f32
    %4 = vector.broadcast %cst : f32 to vector<1x256xf32>
    %cst_6 = arith.constant 0.000000e+00 : f32
    %5 = vector.broadcast %cst_6 : f32 to vector<1x256xf32>
    %c1_i32 = arith.constant 1 : i32
    %6 = tpu.dynamic_rotate %1 by %c1_i32 dim 0 : vector<8x256xf32>, i32 -> vector<8x256xf32>
    %c7_i32 = arith.constant 7 : i32
    %7 = tpu.dynamic_rotate %1 by %c7_i32 dim 0 : vector<8x256xf32>, i32 -> vector<8x256xf32>
    %8 = vector.extract_strided_slice %2 {offsets = [0, 0], sizes = [1, 256], strides = [1, 1]} : vector<9x256xf32> to vector<1x256xf32>
    %9 = vector.broadcast %8 : vector<1x256xf32> to vector<8x256xf32>
    %10 = arith.mulf %6, %9 : vector<8x256xf32>
    %11 = vector.extract_strided_slice %2 {offsets = [3, 0], sizes = [1, 256], strides = [1, 1]} : vector<9x256xf32> to vector<1x256xf32>
    %12 = vector.broadcast %11 : vector<1x256xf32> to vector<8x256xf32>
    %13 = arith.mulf %1, %12 : vector<8x256xf32>
    %14 = arith.addf %10, %13 : vector<8x256xf32>
    %15 = vector.extract_strided_slice %2 {offsets = [6, 0], sizes = [1, 256], strides = [1, 1]} : vector<9x256xf32> to vector<1x256xf32>
    %16 = vector.broadcast %15 : vector<1x256xf32> to vector<8x256xf32>
    %17 = arith.mulf %7, %16 : vector<8x256xf32>
    %18 = arith.addf %14, %17 : vector<8x256xf32>
    %19 = vector.extract_strided_slice %2 {offsets = [1, 0], sizes = [1, 256], strides = [1, 1]} : vector<9x256xf32> to vector<1x256xf32>
    %20 = vector.broadcast %19 : vector<1x256xf32> to vector<8x256xf32>
    %21 = arith.mulf %6, %20 : vector<8x256xf32>
    %22 = vector.extract_strided_slice %2 {offsets = [4, 0], sizes = [1, 256], strides = [1, 1]} : vector<9x256xf32> to vector<1x256xf32>
    %23 = vector.broadcast %22 : vector<1x256xf32> to vector<8x256xf32>
    %24 = arith.mulf %1, %23 : vector<8x256xf32>
    %25 = arith.addf %21, %24 : vector<8x256xf32>
    %26 = vector.extract_strided_slice %2 {offsets = [7, 0], sizes = [1, 256], strides = [1, 1]} : vector<9x256xf32> to vector<1x256xf32>
    %27 = vector.broadcast %26 : vector<1x256xf32> to vector<8x256xf32>
    %28 = arith.mulf %7, %27 : vector<8x256xf32>
    %29 = arith.addf %25, %28 : vector<8x256xf32>
    %30 = vector.extract_strided_slice %2 {offsets = [2, 0], sizes = [1, 256], strides = [1, 1]} : vector<9x256xf32> to vector<1x256xf32>
    %31 = vector.broadcast %30 : vector<1x256xf32> to vector<8x256xf32>
    %32 = arith.mulf %6, %31 : vector<8x256xf32>
    %33 = vector.extract_strided_slice %2 {offsets = [5, 0], sizes = [1, 256], strides = [1, 1]} : vector<9x256xf32> to vector<1x256xf32>
    %34 = vector.broadcast %33 : vector<1x256xf32> to vector<8x256xf32>
    %35 = arith.mulf %1, %34 : vector<8x256xf32>
    %36 = arith.addf %32, %35 : vector<8x256xf32>
    %37 = vector.extract_strided_slice %2 {offsets = [8, 0], sizes = [1, 256], strides = [1, 1]} : vector<9x256xf32> to vector<1x256xf32>
    %38 = vector.broadcast %37 : vector<1x256xf32> to vector<8x256xf32>
    %39 = arith.mulf %7, %38 : vector<8x256xf32>
    %40 = arith.addf %36, %39 : vector<8x256xf32>
    %41 = vector.broadcast %3 : vector<1x256xf32> to vector<8x256xf32>
    %42 = arith.addf %41, %29 : vector<8x256xf32>
    %c32_i32 = arith.constant 32 : i32
    %43 = tpu.dynamic_rotate %18 by %c32_i32 dim 1 : vector<8x256xf32>, i32 -> vector<8x256xf32>
    %44 = arith.addf %42, %43 : vector<8x256xf32>
    %c224_i32 = arith.constant 224 : i32
    %45 = tpu.dynamic_rotate %40 by %c224_i32 dim 1 : vector<8x256xf32>, i32 -> vector<8x256xf32>
    %46 = arith.addf %44, %45 : vector<8x256xf32>
    %c0_7 = arith.constant 0 : index
    %c0_8 = arith.constant 0 : index
    %c0_9 = arith.constant 0 : index
    %47 = vector.load %arg4[%c0_7, %c0_8, %c0_9] : memref<1x8x256xf32, #tpu.memory_space<vmem>>, vector<1x8x256xf32>
    %48 = vector.shape_cast %47 : vector<1x8x256xf32> to vector<8x256xf32>
    %49 = vector.shape_cast %46 : vector<8x256xf32> to vector<1x8x256xf32>
    tpu.vector_store %arg4[%c0_7, %c0_8, %c0_9], %49 {strides = array<i32>} : memref<1x8x256xf32, #tpu.memory_space<vmem>>, vector<1x8x256xf32>,
    %50 = vector.extract_strided_slice %1 {offsets = [7, 0], sizes = [1, 256], strides = [1, 1]} : vector<8x256xf32> to vector<1x256xf32>
    %51 = arith.subf %4, %50 : vector<1x256xf32>
    %52 = vector.extract_strided_slice %1 {offsets = [0, 0], sizes = [1, 256], strides = [1, 1]} : vector<8x256xf32> to vector<1x256xf32>
    %53 = arith.subf %5, %52 : vector<1x256xf32>
    %54 = vector.extract_strided_slice %2 {offsets = [1, 0], sizes = [1, 256], strides = [1, 1]} : vector<9x256xf32> to vector<1x256xf32>
    %55 = arith.mulf %51, %54 : vector<1x256xf32>
    %56 = vector.extract_strided_slice %2 {offsets = [0, 0], sizes = [1, 256], strides = [1, 1]} : vector<9x256xf32> to vector<1x256xf32>
    %57 = arith.mulf %51, %56 : vector<1x256xf32>
    %c32_i32_10 = arith.constant 32 : i32
    %58 = tpu.dynamic_rotate %57 by %c32_i32_10 dim 1 : vector<1x256xf32>, i32 -> vector<1x256xf32>
    %59 = arith.addf %55, %58 : vector<1x256xf32>
    %60 = vector.extract_strided_slice %2 {offsets = [2, 0], sizes = [1, 256], strides = [1, 1]} : vector<9x256xf32> to vector<1x256xf32>
    %61 = arith.mulf %51, %60 : vector<1x256xf32>
    %c224_i32_11 = arith.constant 224 : i32
    %62 = tpu.dynamic_rotate %61 by %c224_i32_11 dim 1 : vector<1x256xf32>, i32 -> vector<1x256xf32>
    %63 = arith.addf %59, %62 : vector<1x256xf32>
    %64 = vector.extract_strided_slice %2 {offsets = [7, 0], sizes = [1, 256], strides = [1, 1]} : vector<9x256xf32> to vector<1x256xf32>
    %65 = arith.mulf %53, %64 : vector<1x256xf32>
    %66 = vector.extract_strided_slice %2 {offsets = [6, 0], sizes = [1, 256], strides = [1, 1]} : vector<9x256xf32> to vector<1x256xf32>
    %67 = arith.mulf %53, %66 : vector<1x256xf32>
    %c32_i32_12 = arith.constant 32 : i32
    %68 = tpu.dynamic_rotate %67 by %c32_i32_12 dim 1 : vector<1x256xf32>, i32 -> vector<1x256xf32>
    %69 = arith.addf %65, %68 : vector<1x256xf32>
    %70 = vector.extract_strided_slice %2 {offsets = [8, 0], sizes = [1, 256], strides = [1, 1]} : vector<9x256xf32> to vector<1x256xf32>
    %71 = arith.mulf %53, %70 : vector<1x256xf32>
    %c224_i32_13 = arith.constant 224 : i32
    %72 = tpu.dynamic_rotate %71 by %c224_i32_13 dim 1 : vector<1x256xf32>, i32 -> vector<1x256xf32>
    %73 = arith.addf %69, %72 : vector<1x256xf32>
    %74 = vector.extract_strided_slice %46 {offsets = [0, 0], sizes = [1, 256], strides = [1, 1]} : vector<8x256xf32> to vector<1x256xf32>
    %75 = arith.addf %74, %63 : vector<1x256xf32>
    %c0_14 = arith.constant 0 : index
    %c0_15 = arith.constant 0 : index
    %c0_16 = arith.constant 0 : index
    %76 = vector.load %arg4[%c0_14, %c0_15, %c0_16] : memref<1x8x256xf32, #tpu.memory_space<vmem>>, vector<1x1x256xf32>
    %77 = vector.shape_cast %76 : vector<1x1x256xf32> to vector<1x256xf32>
    %78 = vector.shape_cast %75 : vector<1x256xf32> to vector<1x1x256xf32>
    tpu.vector_store %arg4[%c0_14, %c0_15, %c0_16], %78 {strides = array<i32>} : memref<1x8x256xf32, #tpu.memory_space<vmem>>, vector<1x1x256xf32>,
    %79 = vector.extract_strided_slice %46 {offsets = [7, 0], sizes = [1, 256], strides = [1, 1]} : vector<8x256xf32> to vector<1x256xf32>
    %80 = arith.addf %79, %73 : vector<1x256xf32>
    %c0_17 = arith.constant 0 : index
    %c7 = arith.constant 7 : index
    %c0_18 = arith.constant 0 : index
    %81 = vector.load %arg4[%c0_17, %c7, %c0_18] : memref<1x8x256xf32, #tpu.memory_space<vmem>>, vector<1x1x256xf32>
    %82 = vector.shape_cast %81 : vector<1x1x256xf32> to vector<1x256xf32>
    %83 = vector.shape_cast %80 : vector<1x256xf32> to vector<1x1x256xf32>
    tpu.vector_store %arg4[%c0_17, %c7, %c0_18], %83 {strides = array<i32>} : memref<1x8x256xf32, #tpu.memory_space<vmem>>, vector<1x1x256xf32>,
    return
  }
  func.func @transform_0(%arg0: i32) -> (i32, i32, i32) {
    %c0_i32 = arith.constant 0 : i32
    %c0_i32_0 = arith.constant 0 : i32
    %c0_i32_1 = arith.constant 0 : i32
    return %arg0, %c0_i32, %c0_i32_0 : i32, i32, i32
  }
  func.func @transform_1(%arg0: i32) -> (i32, i32) {
    %c0_i32 = arith.constant 0 : i32
    %c0_i32_0 = arith.constant 0 : i32
    %c0_i32_1 = arith.constant 0 : i32
    return %c0_i32, %c0_i32_0 : i32, i32
  }
  func.func @transform_2(%arg0: i32) -> (i32, i32) {
    %c0_i32 = arith.constant 0 : i32
    %c0_i32_0 = arith.constant 0 : i32
    %c0_i32_1 = arith.constant 0 : i32
    return %c0_i32, %c0_i32_0 : i32, i32
  }
  func.func @transform_3(%arg0: i32) -> (i32, i32, i32) {
    %c0_i32 = arith.constant 0 : i32
    %c0_i32_0 = arith.constant 0 : i32
    %c0_i32_1 = arith.constant 0 : i32
    return %arg0, %c0_i32, %c0_i32_0 : i32, i32, i32
  }
}

</mosaic_0001>

<llo_original>
// kernel: tpu_custom_call.1
$region0: #{tpu_custom_call.1}
  #allocation0 [shape = 'u32[]', space=smem, size = 0x4, offset = 0x4, fixed_abs, tag = 'smem constant byte address 0x4 - core index']
  #allocation1 [shape = 'u32[144,128]{1,0:T(1,128)}', space=vmem, size = 0x12000, scoped, tag = 'internal scratch']
  %s0 = inlined_call_operand.hbm [shape: f32[2,8,256], index: 0, kind: input, shape index: {}]
  %s1 = inlined_call_operand.hbm [shape: f32[9,256], index: 1, kind: input, shape index: {}]
  %s2 = inlined_call_operand.vmem [shape: f32[1,256], index: 2, kind: input, shape index: {}]
  %s3 = inlined_call_operand.hbm [shape: f32[2,8,256], index: 3, kind: output, shape index: {}]
  %s4 = sld [smem:[#allocation0]]
  $region53: #{tpu_custom_call.1} parent=0
    _
  %s6 = ssub.s32 1, %s4
  %s7 = scalar_select 0, %s6, %s4
  $region1: #{tpu_custom_call.1} parent=0
    #allocation2 [shape = 'u8[16384]{0}', space=vmem, size = 0x4000, scoped, tag = 'input window, operand 0']
    #allocation3 [shape = 's32[2]{0}', space=sflag, size = 0x8, scoped, tag = 'scoped memory for tpu_custom_call.1']
    #allocation4 [shape = 's32[2]{0}', space=sflag, size = 0x8, scoped, tag = 'scoped memory for tpu_custom_call.1']
    #allocation5 [shape = 'u8[16384]{0}', space=vmem, size = 0x4000, scoped, tag = 'input window, operand 1, single buffered']
    #allocation6 [shape = 's32[1]{0}', space=sflag, size = 0x4, scoped, tag = 'scoped memory for tpu_custom_call.1']
    #allocation7 [shape = 'u8[16384]{0}', space=vmem, size = 0x4000, scoped, tag = 'output window, operand 0']
    %8 = vsyncpa [#allocation3], 0
    %s9 = scalar_lea.sflag [#allocation3], 1
    %10 = vsyncpa %s9, 0
    %11 = vsyncpa [#allocation6], 0
    %12 = vsyncpa [#allocation4], 0
    %s13 = scalar_lea.sflag [#allocation4], 1
    %14 = vsyncpa %s13, 0
    loop: start=0, step=1, limit=4
    $region2: #{tpu_custom_call.1} parent=1 // loop_pre_header
      _
    $region3: #{tpu_custom_call.1} parent=1 // loop_header
      %s16 = sphi 0, %s20
      %p17 = scmp.ge.s32.totalorder %s16, 4
      %s26 = sphi 0, %s28
      %s29 = sphi 0, %s26
      %s30 = sphi 0, %s29
      %s46 = sphi 0, %s30
      %s50 = sphi 0, %s50
      %s52 = sphi 0, %s50
      %s53 = sphi 0, %s52
      %s67 = sphi 0, %s53
      %s71 = sphi 0, %s71
      %s73 = sphi 0, %s71
      %s74 = sphi 0, %s73
      %s88 = sphi 0, %s74
      %s94 = sphi 0, %s96
      %s97 = sphi 0, %s94
      %s98 = sphi 0, %s97
      %s114 = sphi 0, %s98
    $region4: #{tpu_custom_call.1} parent=1 // loop_header_branch
      %19 = sbr.rel (%p17) target = $region8
    $region5: #{tpu_custom_call.1} parent=1 // loop_body
      %s21 = ssub.s32 %s16, 1
      %s22 = ssub.s32 %s16, 2
      %s23 = sadd.s32 %s16, 1
      %s24 = ssub.s32 %s16, %s23
      %p25 = scmp.eq.s32.totalorder %s24, 0
      %s27 = sadd.s32 %s26, 1
      %s28 = scalar_select %p25, %s26, %s27
      %p31 = pneg %p25
      %p32 = scmp.eq.s32.totalorder %s16, 1
      %p33 = por %p31, %p32
      %p34 = scmp.ne.s32.totalorder %s26, %s29
      %p35 = scmp.eq.s32.totalorder %s16, 0
      %p36 = por %p34, %p35
      %p37 = scmp.ne.s32.totalorder %s26, %s29
      %p38 = scmp.eq.s32.totalorder %s21, 1
      %p39 = por %p37, %p38
      %p40 = scmp.ne.s32.totalorder %s29, %s30
      %p41 = scmp.eq.s32.totalorder %s21, 0
      %p42 = por %p40, %p41
      %p43 = scmp.ne.s32.totalorder %s29, %s30
      %p44 = scmp.eq.s32.totalorder %s22, 1
      %p45 = por %p43, %p44
      %p47 = scmp.ne.s32.totalorder %s30, %s46
      %p48 = scmp.eq.s32.totalorder %s22, 0
      %p49 = por %p47, %p48
      %s51 = sadd.s32 %s50, 1
      %p54 = scmp.eq.s32.totalorder %s16, 1
      %p55 = scmp.ne.s32.totalorder %s50, %s52
      %p56 = scmp.eq.s32.totalorder %s16, 0
      %p57 = por %p55, %p56
      %p58 = scmp.ne.s32.totalorder %s50, %s52
      %p59 = scmp.eq.s32.totalorder %s21, 1
      %p60 = por %p58, %p59
      %p61 = scmp.ne.s32.totalorder %s52, %s53
      %p62 = scmp.eq.s32.totalorder %s21, 0
      %p63 = por %p61, %p62
      %p64 = scmp.ne.s32.totalorder %s52, %s53
      %p65 = scmp.eq.s32.totalorder %s22, 1
      %p66 = por %p64, %p65
      %p68 = scmp.ne.s32.totalorder %s53, %s67
      %p69 = scmp.eq.s32.totalorder %s22, 0
      %p70 = por %p68, %p69
      %s72 = sadd.s32 %s71, 1
      %p75 = scmp.eq.s32.totalorder %s16, 1
      %p76 = scmp.ne.s32.totalorder %s71, %s73
      %p77 = scmp.eq.s32.totalorder %s16, 0
      %p78 = por %p76, %p77
      %p79 = scmp.ne.s32.totalorder %s71, %s73
      %p80 = scmp.eq.s32.totalorder %s21, 1
      %p81 = por %p79, %p80
      %p82 = scmp.ne.s32.totalorder %s73, %s74
      %p83 = scmp.eq.s32.totalorder %s21, 0
      %p84 = por %p82, %p83
      %p85 = scmp.ne.s32.totalorder %s73, %s74
      %p86 = scmp.eq.s32.totalorder %s22, 1
      %p87 = por %p85, %p86
      %p89 = scmp.ne.s32.totalorder %s74, %s88
      %p90 = scmp.eq.s32.totalorder %s22, 0
      %p91 = por %p89, %p90
      %s92 = ssub.s32 %s16, %s23
      %p93 = scmp.eq.s32.totalorder %s92, 0
      %s95 = sadd.s32 %s94, 1
      %s96 = scalar_select %p93, %s94, %s95
      %p99 = pneg %p93
      %p100 = scmp.eq.s32.totalorder %s16, 1
      %p101 = por %p99, %p100
      %p102 = scmp.ne.s32.totalorder %s94, %s97
      %p103 = scmp.eq.s32.totalorder %s16, 0
      %p104 = por %p102, %p103
      %p105 = scmp.ne.s32.totalorder %s94, %s97
      %p106 = scmp.eq.s32.totalorder %s21, 1
      %p107 = por %p105, %p106
      %p108 = scmp.ne.s32.totalorder %s97, %s98
      %p109 = scmp.eq.s32.totalorder %s21, 0
      %p110 = por %p108, %p109
      %p111 = scmp.ne.s32.totalorder %s97, %s98
      %p112 = scmp.eq.s32.totalorder %s22, 1
      %p113 = por %p111, %p112
      %p115 = scmp.ne.s32.totalorder %s98, %s114
      %p116 = scmp.eq.s32.totalorder %s22, 0
      %p117 = por %p115, %p116
      %p118 = scmp.le.s32.totalorder 1, %s16
      %p119 = scmp.lt.s32.totalorder %s16, 3
      %p120 = pnand %p118, %p119
      %p121 = pneg %p120
      // Predicated region
      $region9: #{tpu_custom_call.1} parent=5 // pred_check
        _
      $region10: #{tpu_custom_call.1} parent=5 // pred_check_branch
        %123 = sbr.rel (%p120) target = $region12
      $region11: #{tpu_custom_call.1} parent=5 // pred_region
        %s124 = ssub.s32 %s16, 1
        // Predicated region
        $region13: #{tpu_custom_call.1} parent=11 // pred_check
          %p125 = pneg %p63
        $region14: #{tpu_custom_call.1} parent=11 // pred_check_branch
          %127 = sbr.rel (%p125) target = $region16
        $region15: #{tpu_custom_call.1} parent=11 // pred_region
          %s129 = ssub.s32 512, 512
          %130 = vsyncadd [#allocation6], %s129
          %s131 = sshll.u32 [#allocation5], 4
          %s132 = int_to_ptr.vmem [resolvable:$true] %s131
          %137 = dma.hbm_to_vmem [thread:$0]  %s1, 512, %s132, [#allocation6], 256, 256, 16
        $region16: #{tpu_custom_call.1} parent=11 // pred_fallthru
          _
        // Predicated region
        $region17: #{tpu_custom_call.1} parent=11 // pred_check
          %p138 = pneg %p84
        $region18: #{tpu_custom_call.1} parent=11 // pred_check_branch
          %140 = sbr.rel (%p138) target = $region20
        $region19: #{tpu_custom_call.1} parent=11 // pred_region
          _
        $region20: #{tpu_custom_call.1} parent=11 // pred_fallthru
          _
      $region12: #{tpu_custom_call.1} parent=5 // pred_fallthru
        _
      %p141 = scmp.lt.s32.totalorder %s16, 2
      // Predicated region
      $region21: #{tpu_custom_call.1} parent=5 // pred_check
        %p142 = pneg %p141
      $region22: #{tpu_custom_call.1} parent=5 // pred_check_branch
        %144 = sbr.rel (%p142) target = $region24
      $region23: #{tpu_custom_call.1} parent=5 // pred_region
        // Predicated region
        $region25: #{tpu_custom_call.1} parent=23 // pred_check
          %p145 = pneg %p36
        $region26: #{tpu_custom_call.1} parent=23 // pred_check_branch
          %147 = sbr.rel (%p145) target = $region28
        $region27: #{tpu_custom_call.1} parent=23 // pred_region
          %s148 = sand.u32 %s26, 1
          %s149 = scalar_lea.sflag [#allocation3], %s148
          %s150 = sand.u32 %s26, 1
          %s151 = smul.addr %s150, 16
          %s152 = scalar_lea.vmem [#allocation2], %s151
          %s154 = ssub.s32 256, 256
          %155 = vsyncadd %s149, %s154
          %s156 = smul.addr %s16, 2
          %s157 = smul.addr %s156, 128
          %s158 = scalar_lea.hbm %s0, %s157
          %s160 = sshll.u32 %s152, 4
          %s161 = int_to_ptr.vmem [resolvable:$true] %s160
          %163 = dma.hbm_to_vmem [thread:$0]  %s158, 256, %s161, %s149
        $region28: #{tpu_custom_call.1} parent=23 // pred_fallthru
          _
      $region24: #{tpu_custom_call.1} parent=5 // pred_fallthru
        _
      %p164 = scmp.le.s32.totalorder 1, %s16
      %p165 = scmp.lt.s32.totalorder %s16, 3
      %p166 = pnand %p164, %p165
      %p167 = pneg %p166
      // Predicated region
      $region29: #{tpu_custom_call.1} parent=5 // pred_check
        _
      $region30: #{tpu_custom_call.1} parent=5 // pred_check_branch
        %169 = sbr.rel (%p166) target = $region32
      $region31: #{tpu_custom_call.1} parent=5 // pred_region
        %s170 = ssub.s32 %s16, 1
        %s171 = sand.u32 %s29, 1
        %s172 = scalar_lea.sflag [#allocation3], %s171
        %s173 = sand.u32 %s29, 1
        %s174 = smul.addr %s173, 16
        %s175 = scalar_lea.vmem [#allocation2], %s174
        // Predicated region
        $region33: #{tpu_custom_call.1} parent=31 // pred_check
          %p176 = pneg %p42
        $region34: #{tpu_custom_call.1} parent=31 // pred_check_branch
          %178 = sbr.rel (%p176) target = $region36
        $region35: #{tpu_custom_call.1} parent=31 // pred_region
          %179 = dma.done %s172, 256
        $region36: #{tpu_custom_call.1} parent=31 // pred_fallthru
          _
        // Predicated region
        $region37: #{tpu_custom_call.1} parent=31 // pred_check
          %p180 = pneg %p63
        $region38: #{tpu_custom_call.1} parent=31 // pred_check_branch
          %182 = sbr.rel (%p180) target = $region40
        $region39: #{tpu_custom_call.1} parent=31 // pred_region
          %183 = dma.done [#allocation6], 512
        $region40: #{tpu_custom_call.1} parent=31 // pred_fallthru
          _
        %s184 = sand.u32 %s29, 1
        %s185 = scalar_lea.sflag [#allocation3], %s184
        %s186 = sand.u32 %s29, 1
        %s187 = smul.addr %s186, 16
        %s188 = scalar_lea.vmem [#allocation2], %s187
        %p189 = pneg %p42
        %p190 = pneg %p39
        %p191 = pneg %p63
        %p192 = pneg %p60
        %p193 = pneg %p84
        %p194 = pneg %p81
        %p195 = pneg %p110
        %p196 = pneg %p107
        %s197 = sand.u32 %s97, 1
        %s198 = scalar_lea.sflag [#allocation4], %s197
        %s199 = sand.u32 %s97, 1
        %s200 = smul.addr %s199, 16
        %s201 = scalar_lea.vmem [#allocation7], %s200
        %v202 = vld [vmem:[%s175] sm:$0xff]
        %v203 = vld [vmem:[%s175 + $0x8] sm:$0xff]
        %v204 = vld [vmem:[#allocation5] sm:$0xff]
        %v205 = vld [vmem:[#allocation5 + $0x8] sm:$0xff]
        %v206 = vld [vmem:[#allocation5 + $0x10] sm:$0x1]
        %v207 = vld [vmem:[#allocation5 + $0x18] sm:$0x1]
        %v208 = vld [vmem:[%s2] sm:$0x3]
        %v209 = vrot.slane %v202, 7
        %v210 = vrot.slane %v203, 7
        %v211 = vrot.slane %v202, 1
        %v212 = vrot.slane %v203, 1
        %v213 = vlaneseq
        %v214 = vshrl.u32 %v213, 7
        %v215 = vsub.s32 0, %v214
        %v216 = vrot.slane %v204, %v215
        %v217 = vlaneseq
        %v218 = vshrl.u32 %v217, 7
        %v219 = vsub.s32 0, %v218
        %v220 = vrot.slane %v205, %v219
        %v221 = vmul.f32 %v209, %v216
        %v222 = vmul.f32 %v210, %v220
        %v223 = vlaneseq
        %v224 = vshrl.u32 %v223, 7
        %v225 = vsub.s32 3, %v224
        %v226 = vrot.slane %v204, %v225
        %v227 = vlaneseq
        %v228 = vshrl.u32 %v227, 7
        %v229 = vsub.s32 3, %v228
        %v230 = vrot.slane %v205, %v229
        %v231 = vmul.f32 %v202, %v226
        %v232 = vmul.f32 %v203, %v230
        %v233 = vadd.f32 %v221, %v231
        %v234 = vadd.f32 %v222, %v232
        %v235 = vlaneseq
        %v236 = vshrl.u32 %v235, 7
        %v237 = vsub.s32 6, %v236
        %v238 = vrot.slane %v204, %v237
        %v239 = vlaneseq
        %v240 = vshrl.u32 %v239, 7
        %v241 = vsub.s32 6, %v240
        %v242 = vrot.slane %v205, %v241
        %v243 = vmul.f32 %v211, %v238
        %v244 = vmul.f32 %v212, %v242
        %v245 = vadd.f32 %v233, %v243
        %v246 = vadd.f32 %v234, %v244
        %v247 = vlaneseq
        %v248 = vshrl.u32 %v247, 7
        %v249 = vsub.s32 1, %v248
        %v250 = vrot.slane %v204, %v249
        %v251 = vlaneseq
        %v252 = vshrl.u32 %v251, 7
        %v253 = vsub.s32 1, %v252
        %v254 = vrot.slane %v205, %v253
        %v255 = vmul.f32 %v209, %v250
        %v256 = vmul.f32 %v210, %v254
        %v257 = vlaneseq
        %v258 = vshrl.u32 %v257, 7
        %v259 = vsub.s32 4, %v258
        %v260 = vrot.slane %v204, %v259
        %v261 = vlaneseq
        %v262 = vshrl.u32 %v261, 7
        %v263 = vsub.s32 4, %v262
        %v264 = vrot.slane %v205, %v263
        %v265 = vmul.f32 %v202, %v260
        %v266 = vmul.f32 %v203, %v264
        %v267 = vadd.f32 %v255, %v265
        %v268 = vadd.f32 %v256, %v266
        %v269 = vlaneseq
        %v270 = vshrl.u32 %v269, 7
        %v271 = vsub.s32 7, %v270
        %v272 = vrot.slane %v204, %v271
        %v273 = vlaneseq
        %v274 = vshrl.u32 %v273, 7
        %v275 = vsub.s32 7, %v274
        %v276 = vrot.slane %v205, %v275
        %v277 = vmul.f32 %v211, %v272
        %v278 = vmul.f32 %v212, %v276
        %v279 = vadd.f32 %v267, %v277
        %v280 = vadd.f32 %v268, %v278
        %v281 = vlaneseq
        %v282 = vshrl.u32 %v281, 7
        %v283 = vsub.s32 2, %v282
        %v284 = vrot.slane %v204, %v283
        %v285 = vlaneseq
        %v286 = vshrl.u32 %v285, 7
        %v287 = vsub.s32 2, %v286
        %v288 = vrot.slane %v205, %v287
        %v289 = vmul.f32 %v209, %v284
        %v290 = vmul.f32 %v210, %v288
        %v291 = vlaneseq
        %v292 = vshrl.u32 %v291, 7
        %v293 = vsub.s32 5, %v292
        %v294 = vrot.slane %v204, %v293
        %v295 = vlaneseq
        %v296 = vshrl.u32 %v295, 7
        %v297 = vsub.s32 5, %v296
        %v298 = vrot.slane %v205, %v297
        %v299 = vmul.f32 %v202, %v294
        %v300 = vmul.f32 %v203, %v298
        %v301 = vadd.f32 %v289, %v299
        %v302 = vadd.f32 %v290, %v300
        %v303 = vlaneseq
        %v304 = vshrl.u32 %v303, 7
        %v305 = vsub.s32 0, %v304
        %v306 = vrot.slane %v206, %v305
        %v307 = vlaneseq
        %v308 = vshrl.u32 %v307, 7
        %v309 = vsub.s32 0, %v308
        %v310 = vrot.slane %v207, %v309
        %v311 = vmul.f32 %v211, %v306
        %v312 = vmul.f32 %v212, %v310
        %v313 = vadd.f32 %v301, %v311
        %v314 = vadd.f32 %v302, %v312
        %v316 = vlaneseq
        %v317 = vshrl.u32 %v316, 7
        %v318 = vsub.s32 0, %v317
        %v319 = vrot.slane %v208, %v318
        %v320 = vlaneseq
        %v321 = vshrl.u32 %v320, 7
        %v322 = vsub.s32 1, %v321
        %v323 = vrot.slane %v208, %v322
        %v326 = vadd.f32 %v319, %v279
        %v327 = vadd.f32 %v323, %v280
        %328 = vrot.lane.b32.xlu0 %v245, 32
        %v329 = vpop.permute.xlu0 %328
        %330 = vrot.lane.b32.xlu0 %v246, 32
        %v331 = vpop.permute.xlu0 %330
        %v332 = vlaneseq
        %v333 = vand.u32 %v332, 127
        %vm334 = vcmp.lt.s32.totalorder %v333, 32
        %v335 = vsel %vm334, %v329, %v331
        %v336 = vsel %vm334, %v331, %v329
        %v337 = vadd.f32 %v326, %v336
        %v338 = vadd.f32 %v327, %v335
        %339 = vrot.lane.b32.xlu0 %v313, 96
        %v340 = vpop.permute.xlu0 %339
        %341 = vrot.lane.b32.xlu0 %v314, 96
        %v342 = vpop.permute.xlu0 %341
        %vm343 = vcmp.lt.s32.totalorder %v333, 96
        %v344 = vsel %vm343, %v340, %v342
        %v345 = vsel %vm343, %v342, %v340
        %v346 = vadd.f32 %v337, %v344
        %v347 = vadd.f32 %v338, %v345
        %348 = vst [vmem:[%s201] sm:$0xff] %v346
        %349 = vst [vmem:[%s201 + $0x8] sm:$0xff] %v347
        %v350 = vsub.f32 0.0, %v202
        %v351 = vsub.f32 0.0, %v203
        %v354 = vrot.slane %v204, 2
        %v355 = vrot.slane %v205, 2
        %v358 = vmul.f32 %v350, %v354
        %v359 = vmul.f32 %v351, %v355
        %v360 = vrot.slane %v204, 1
        %v361 = vrot.slane %v205, 1
        %v364 = vmul.f32 %v350, %v360
        %v365 = vmul.f32 %v351, %v361
        %v368 = vrot.slane %v364, 7
        %v369 = vrot.slane %v365, 7
        %372 = vrot.lane.b32.xlu0 %v368, 32
        %v373 = vpop.permute.xlu0 %372
        %374 = vrot.lane.b32.xlu0 %v369, 32
        %v375 = vpop.permute.xlu0 %374
        %v376 = vsel %vm334, %v373, %v375
        %v377 = vsel %vm334, %v375, %v373
        %v380 = vrot.slane %v377, 1
        %v381 = vrot.slane %v376, 1
        %v384 = vadd.f32 %v358, %v380
        %v385 = vadd.f32 %v359, %v381
        %v386 = vrot.slane %v204, 3
        %v387 = vrot.slane %v205, 3
        %v390 = vmul.f32 %v350, %v386
        %v391 = vmul.f32 %v351, %v387
        %v394 = vrot.slane %v390, 7
        %v395 = vrot.slane %v391, 7
        %398 = vrot.lane.b32.xlu0 %v394, 96
        %v399 = vpop.permute.xlu0 %398
        %400 = vrot.lane.b32.xlu0 %v395, 96
        %v401 = vpop.permute.xlu0 %400
        %v402 = vsel %vm343, %v399, %v401
        %v403 = vsel %vm343, %v401, %v399
        %v406 = vrot.slane %v402, 1
        %v407 = vrot.slane %v403, 1
        %v410 = vadd.f32 %v384, %v406
        %v411 = vadd.f32 %v385, %v407
        %v412 = vrot.slane %v204, 7
        %v413 = vrot.slane %v205, 7
        %v416 = vmul.f32 %v350, %v412
        %v417 = vmul.f32 %v351, %v413
        %v418 = vrot.slane %v204, 6
        %v419 = vrot.slane %v205, 6
        %v422 = vmul.f32 %v350, %v418
        %v423 = vmul.f32 %v351, %v419
        %424 = vrot.lane.b32.xlu0 %v422, 32
        %v425 = vpop.permute.xlu0 %424
        %426 = vrot.lane.b32.xlu0 %v423, 32
        %v427 = vpop.permute.xlu0 %426
        %v428 = vsel %vm334, %v425, %v427
        %v429 = vsel %vm334, %v427, %v425
        %v430 = vadd.f32 %v416, %v429
        %v431 = vadd.f32 %v417, %v428
        %v432 = vmul.f32 %v350, %v206
        %v433 = vmul.f32 %v351, %v207
        %434 = vrot.lane.b32.xlu0 %v432, 96
        %v435 = vpop.permute.xlu0 %434
        %436 = vrot.lane.b32.xlu0 %v433, 96
        %v437 = vpop.permute.xlu0 %436
        %v438 = vsel %vm343, %v435, %v437
        %v439 = vsel %vm343, %v437, %v435
        %v440 = vadd.f32 %v430, %v438
        %v441 = vadd.f32 %v431, %v439
        %v444 = vrot.slane %v410, 7
        %v445 = vrot.slane %v411, 7
        %v448 = vadd.f32 %v346, %v444
        %v449 = vadd.f32 %v347, %v445
        %v452 = vcombine.low %v448, %v449
        %v454 = vunpack.c.l.s4 1966171168
        %v455 = vunpack.c.0.s8 %v454
        %v456 = vlaneseq
        %v457 = vshrl.u32 %v456, 7
        %v458 = vsub.s32 %v455, %v457
        %v459 = vrot.slane %v452, %v458
        %v461 = vunpack.c.l.s4 1966171168
        %v462 = vunpack.c.0.s8 %v461
        %v463 = vlaneseq
        %v464 = vshrl.u32 %v463, 7
        %v465 = vsub.s32 %v462, %v464
        %v466 = vrot.slane %v459, %v465
        %v468 = vlaneseq
        %vm469 = vcmp.ge.s32.totalorder %v468, 0
        %vm470 = vcmp.lt.s32.totalorder %v468, 256
        %vm471 = vmand %vm469, %vm470
        %472 = vst.msk [vmem:[%s201] ss:$8 sm:$0x3] %vm471, %v466
        %473 = vst.msk [vmem:[%s201] ss:$8 sm:$0x0] %vm471, %v466
        %v476 = vrot.slane %v440, 1
        %v477 = vrot.slane %v441, 1
        %v480 = vadd.f32 %v346, %v476
        %v481 = vadd.f32 %v347, %v477
        %v484 = vcombine.high %v480, %v481
        %v486 = vunpack.c.l.s4 1966171168
        %v487 = vunpack.c.0.s8 %v486
        %v488 = vlaneseq
        %v489 = vshrl.u32 %v488, 7
        %v490 = vsub.s32 %v487, %v489
        %v491 = vrot.slane %v484, %v490
        %v492 = vcombine.high %v491, %v491
        %v494 = vunpack.c.l.s4 1966171168
        %v495 = vunpack.c.0.s8 %v494
        %v496 = vlaneseq
        %v497 = vshrl.u32 %v496, 7
        %v498 = vsub.s32 %v495, %v497
        %v499 = vrot.slane %v492, %v498
        %v500 = vcombine.high %v499, %v499
        %s502 = scalar_lea.vmem %s201, 7 [#allocation7]
        %503 = vst.msk [vmem:[%s502] ss:$8 sm:$0x3] %vm471, %v500
        %504 = vst.msk [vmem:[%s502] ss:$8 sm:$0x0] %vm471, %v500
        %s505 = sand.u32 %s97, 1
        %s506 = scalar_lea.sflag [#allocation4], %s505
        %s507 = sand.u32 %s97, 1
        %s508 = smul.addr %s507, 16
        %s509 = scalar_lea.vmem [#allocation7], %s508
        // Predicated region
        $region41: #{tpu_custom_call.1} parent=31 // pred_check
          %p510 = pneg %p107
        $region42: #{tpu_custom_call.1} parent=31 // pred_check_branch
          %512 = sbr.rel (%p510) target = $region44
        $region43: #{tpu_custom_call.1} parent=31 // pred_region
          %s514 = ssub.s32 256, 256
          %515 = vsyncadd %s506, %s514
          %s516 = smul.addr %s21, 2
          %s517 = smul.addr %s516, 128
          %s518 = scalar_lea.hbm %s3, %s517
          %s520 = sshll.u32 %s509, 4
          %s521 = int_to_ptr.vmem [resolvable:$true] %s520
          %523 = dma.vmem_to_hbm [thread:$0]  %s521, 256, %s518, %s506
        $region44: #{tpu_custom_call.1} parent=31 // pred_fallthru
          _
      $region32: #{tpu_custom_call.1} parent=5 // pred_fallthru
        _
      %p524 = scmp.le.s32.totalorder 2, %s16
      // Predicated region
      $region45: #{tpu_custom_call.1} parent=5 // pred_check
        %p525 = pneg %p524
      $region46: #{tpu_custom_call.1} parent=5 // pred_check_branch
        %527 = sbr.rel (%p525) target = $region48
      $region47: #{tpu_custom_call.1} parent=5 // pred_region
        %s528 = ssub.s32 %s16, 2
        // Predicated region
        $region49: #{tpu_custom_call.1} parent=47 // pred_check
          %p529 = pneg %p113
        $region50: #{tpu_custom_call.1} parent=47 // pred_check_branch
          %531 = sbr.rel (%p529) target = $region52
        $region51: #{tpu_custom_call.1} parent=47 // pred_region
          %s532 = sand.u32 %s98, 1
          %s533 = scalar_lea.sflag [#allocation4], %s532
          %s534 = sand.u32 %s98, 1
          %s535 = smul.addr %s534, 16
          %s536 = scalar_lea.vmem [#allocation7], %s535
          %537 = dma.done %s533, 256
        $region52: #{tpu_custom_call.1} parent=47 // pred_fallthru
          _
      $region48: #{tpu_custom_call.1} parent=5 // pred_fallthru
        _
    $region6: #{tpu_custom_call.1} parent=1 // loop_footer
      %s20 = sadd.s32 1, %s16
    $region7: #{tpu_custom_call.1} parent=1 // loop_footer_branch
      %15 = sbr.rel target = $region3
    $region8: #{tpu_custom_call.1} parent=1 // loop_exit
      _
    %538 = vsyncpa [#allocation3], 1
    %s539 = scalar_lea.sflag [#allocation3], 1
    %540 = vsyncpa %s539, 1
    %541 = vsyncpa [#allocation6], 1
    %542 = vsyncpa [#allocation4], 1
    %s543 = scalar_lea.sflag [#allocation4], 1
    %544 = vsyncpa %s543, 1

</llo_original>
